<compile_context>
chip_gen: v5e
topology: v5e:2x2
jax: 0.10.0
libtpu: 0.0.40
codegen_flags: <defaults>
</compile_context>

<pallas_src>
import functools
import math

import jax
import jax.numpy as jnp
from jax.experimental import pallas as pl
from jax.experimental.pallas import tpu as pltpu


def _largest_divisor(n, candidates):
    for c in candidates:
        if n % c == 0:
            return c
    return n


def time_embedding_kernel(t_ref, htab_ref, w2_ref, b2_ref, out_ref, x_ref, *, kc):
    """Grid: (batch tile i [parallel], output-column tile j [arbitrary]).

    t_ref    : [block_b, 1]   int32 VMEM   timestep indices for this batch tile
    htab_ref : [T, dim]       bf16  VMEM   fused table = emb_table @ W1 + b1 (resident)
    w2_ref   : [dim, tn]      bf16  VMEM   column tile of second Linear weight
    b2_ref   : [1, tn]        f32   VMEM   column tile of second Linear bias
    out_ref  : [block_b, tn]  f32   VMEM
    x_ref    : [block_b, dim] bf16  VMEM scratch; Swish(gathered rows) for the current
               batch tile, persists across j and is recomputed only when j == 0.
    """
    j = pl.program_id(1)
    T = htab_ref.shape[0]
    block_b, dim = x_ref.shape

    # --- Gather + Swish, once per batch tile, reused for every output-column tile ---
    @pl.when(j == 0)
    def _():
        t_col = t_ref[...]                                            # [block_b, 1] i32
        iota = jax.lax.broadcasted_iota(jnp.int32, (block_b, T), 1)
        onehot = (iota == t_col).astype(htab_ref.dtype)               # [block_b, T] bf16
        # K-chunked: keeps live f32 activations well under the vreg file at large dim
        # and keeps the gather on the MXU (no per-row masked vst stores).
        for c in range(dim // kc):
            sl = pl.ds(c * kc, kc)                                    # static slice
            g = jnp.dot(onehot, htab_ref[:, sl],
                        preferred_element_type=jnp.float32)           # exact row select
            g = g * jax.nn.sigmoid(g)                                 # Swish in f32 (EUP)
            x_ref[:, sl] = g.astype(x_ref.dtype)

    # --- Linear(dim, dim), one output-column tile: bf16 MXU operands, f32 accum ---
    y = jnp.dot(x_ref[...], w2_ref[...],
                preferred_element_type=jnp.float32) + b2_ref[...]
    out_ref[...] = y.astype(out_ref.dtype)


def time_embedding(t, h_table, w2, b2, *, block_b=None, tn=None, interpret=False):
    """t: [B] integer timesteps. h_table: [T, dim] fused (bf16) table.
    w2: [dim, dim] bf16. b2: [dim] f32. Returns [B, dim] f32."""
    B = t.shape[0]
    T, dim = h_table.shape
    assert dim % 128 == 0, "keep the feature dim lane-dense (multiple of 128)"
    assert w2.shape == (dim, dim)

    # Batch tile: 128 fills a v5e MXU pass; 256 fills v6e/v7x rows and halves grid steps.
    if block_b is None:
        if B >= 512:
            block_b = 256
        elif B >= 128:
            block_b = 128
        else:
            block_b = B                      # single tile (== full dim, always legal)
    B_pad = pl.cdiv(B, block_b) * block_b
    nb = B_pad // block_b

    # Output-column tile: stream w2 through VMEM for large dim (v7x VMEM = 64 MiB).
    if tn is None:
        tn = dim if dim <= 1024 else _largest_divisor(dim, (512, 256, 128))
    assert dim % tn == 0 and tn % 128 == 0
    nj = dim // tn

    # K-chunk width for the gather/Swish phase.
    kc = _largest_divisor(dim, (512, 256, 128))

    # Clamp timesteps to [0, T) (nn.Embedding would error on OOB; we pick nearest valid).
    t_i32 = jnp.clip(t.astype(jnp.int32), 0, T - 1).reshape(B, 1)
    if B_pad != B:
        t_i32 = jnp.pad(t_i32, ((0, B_pad - B), (0, 0)))   # pad rows use index 0, sliced off

    b2_row = b2.reshape(1, dim).astype(jnp.float32)

    # Single-buffer grid-invariant operands (they are fetched once; no need for 2x VMEM).
    invariant = pl.Buffered(1)
    w2_mode = invariant if nj == 1 else None     # column-tiled w2/b2 want default 2-deep

    grid_spec = pltpu.PrefetchScalarGridSpec(
        num_scalar_prefetch=0,
        grid=(nb, nj),
        in_specs=[
            pl.BlockSpec((block_b, 1), lambda i, j: (i, 0)),                        # t
            pl.BlockSpec((T, dim), lambda i, j: (0, 0), pipeline_mode=invariant),   # table
            pl.BlockSpec((dim, tn), lambda i, j: (0, j), pipeline_mode=w2_mode),    # w2
            pl.BlockSpec((1, tn), lambda i, j: (0, j), pipeline_mode=w2_mode),      # b2
        ],
        out_specs=pl.BlockSpec((block_b, tn), lambda i, j: (i, j)),
        scratch_shapes=[pltpu.VMEM((block_b, dim), jnp.bfloat16)],   # Swish'd x (bf16)
    )

    cost = pl.CostEstimate(
        flops=(2 * B_pad * T * dim          # one-hot gather matmul
               + 2 * B_pad * dim * dim      # second Linear
               + 3 * B_pad * dim),          # Swish mul + bias add
        transcendentals=B_pad * dim,        # sigmoid
        bytes_accessed=(4 * B_pad
                        + h_table.dtype.itemsize * T * dim
                        + w2.dtype.itemsize * dim * dim
                        + 4 * dim
                        + 4 * B_pad * dim),
    )

    # Rough VMEM budget; only set an explicit limit (with headroom) when it matters.
    vmem_bytes = (2 * block_b * 4
                  + T * dim * h_table.dtype.itemsize
                  + (1 if nj == 1 else 2) * dim * tn * w2.dtype.itemsize
                  + (1 if nj == 1 else 2) * tn * 4
                  + 2 * block_b * tn * 4
                  + block_b * dim * 2)
    vmem_limit = None
    if vmem_bytes > 24 * 1024 * 1024:
        vmem_limit = min(int(vmem_bytes * 1.5) + (2 << 20), 64 * 1024 * 1024)

    out = pl.pallas_call(
        functools.partial(time_embedding_kernel, kc=kc),
        out_shape=jax.ShapeDtypeStruct((B_pad, dim), jnp.float32),
        grid_spec=grid_spec,
        compiler_params=pltpu.CompilerParams(
            dimension_semantics=("parallel", "arbitrary"),   # batch tiles -> both v7x TCs
            vmem_limit_bytes=vmem_limit),
        cost_estimate=cost,
        interpret=interpret,
    )(t_i32, h_table, w2, b2_row)

    return out[:B] if B_pad != B else out


def make_params(T, d_model, dim, key):
    """Parameters exactly as the PyTorch module builds them (weights stored [in, out])."""
    half = jnp.arange(0, d_model, 2, dtype=jnp.float32) / d_model * math.log(10000.0)
    freqs = jnp.exp(-half)                              # [d_model // 2]
    pos = jnp.arange(T, dtype=jnp.float32)
    ang = pos[:, None] * freqs[None, :]                 # [T, d_model // 2]
    emb_table = jnp.stack([jnp.sin(ang), jnp.cos(ang)], axis=-1).reshape(T, d_model)

    k1, k2 = jax.random.split(key)

    def xavier(k, fan_in, fan_out):
        bound = math.sqrt(6.0 / (fan_in + fan_out))
        return jax.random.uniform(k, (fan_in, fan_out), jnp.float32, -bound, bound)

    w1 = xavier(k1, d_model, dim)
    b1 = jnp.zeros((dim,), jnp.float32)
    w2 = xavier(k2, dim, dim)
    b2 = jnp.zeros((dim,), jnp.float32)
    return emb_table, w1, b1, w2, b2


def fuse_params(emb_table, w1, b1, w2, b2):
    """Fold Embedding + Linear1 into one [T, dim] table (bf16 for the MXU gather);
    cast w2 to bf16.  Keep the table in f32 instead if strict f32 parity is required."""
    h_table = (emb_table @ w1 + b1).astype(jnp.bfloat16)
    return h_table, w2.astype(jnp.bfloat16), b2.astype(jnp.float32)


def reference(t, emb_table, w1, b1, w2, b2):
    """Pure-f32 reference matching the PyTorch module's forward."""
    x = emb_table[t]
    h = x @ w1 + b1
    h = h * jax.nn.sigmoid(h)
    return h @ w2 + b2


def reference_fused(t, h_table_bf16, w2_bf16, b2):
    """Reference mirroring the kernel's bf16-table / bf16-MXU math."""
    h = h_table_bf16[t].astype(jnp.float32)
    h = h * jax.nn.sigmoid(h)
    return jnp.dot(h.astype(jnp.bfloat16), w2_bf16,
                   preferred_element_type=jnp.float32) + b2.reshape(1, -1)


if __name__ == "__main__":
    # Small demo shapes; dim is a multiple of 128 so all tiles are lane-dense.
    T, d_model, dim = 16, 32, 128
    B = 8

    key = jax.random.PRNGKey(0)
    kp, kt = jax.random.split(key)
    emb_table, w1, b1, w2, b2 = make_params(T, d_model, dim, kp)
    h_table, w2_bf16, b2_f32 = fuse_params(emb_table, w1, b1, w2, b2)
    t = jax.random.randint(kt, (B,), 0, T, dtype=jnp.int32)

    out = time_embedding(t, h_table, w2_bf16, b2_f32)
    out = jax.block_until_ready(out)

    ref_tight = reference_fused(t, h_table, w2_bf16, b2_f32)   # same math as the kernel
    ref_f32 = reference(t, emb_table, w1, b1, w2, b2)          # original module, f32

    assert out.shape == (B, dim)
    assert jnp.allclose(out, ref_tight, atol=5e-3, rtol=5e-3), (
        "tight mismatch", float(jnp.max(jnp.abs(out - ref_tight))))
    # bf16 table / bf16 MXU operands -> loosened tolerance vs. the pure-f32 forward.
    assert jnp.allclose(out, ref_f32, atol=5e-2, rtol=5e-2), (
        "f32 mismatch", float(jnp.max(jnp.abs(out - ref_f32))))

    print("KERNEL_OK")
</pallas_src>

<mosaic_0001>
module attributes {stable_mosaic.version = 11 : i64} {
  func.func @time_embedding_kernel(%arg0: i32, %arg1: i32, %arg2: memref<8x1xi32, #tpu.memory_space<vmem>>, %arg3: memref<16x128xbf16, #tpu.memory_space<vmem>>, %arg4: memref<128x128xbf16, #tpu.memory_space<vmem>>, %arg5: memref<1x128xf32, #tpu.memory_space<vmem>>, %arg6: memref<8x128xf32, #tpu.memory_space<vmem>>, %arg7: memref<8x128xbf16, #tpu.memory_space<vmem>>) attributes {dimension_semantics = [#tpu.dimension_semantics<parallel>, #tpu.dimension_semantics<arbitrary>], iteration_bounds = array<i64: 1, 1>, scalar_prefetch = 0 : i64, scratch_operands = 1 : i64, tpu.core_type = #tpu.core_type<tc>, window_params = [{transform_indices = @transform_0, window_bounds = array<i64: 8, 1>}, {pipeline_mode = #tpu.pipeline_mode<synchronous>, transform_indices = @transform_1, window_bounds = array<i64: 16, 128>}, {pipeline_mode = #tpu.pipeline_mode<synchronous>, transform_indices = @transform_2, window_bounds = array<i64: 128, 128>}, {pipeline_mode = #tpu.pipeline_mode<synchronous>, transform_indices = @transform_3, window_bounds = array<i64: 1, 128>}, {transform_indices = @transform_4, window_bounds = array<i64: 8, 128>}]} {
    %c0_i32 = arith.constant 0 : i32
    %0 = arith.cmpi eq, %arg1, %c0_i32 : i32
    %1 = arith.extui %0 : i1 to i32
    %c0_i32_0 = arith.constant 0 : i32
    %2 = arith.cmpi ne, %1, %c0_i32_0 : i32
    scf.if %2 {
      %c0_8 = arith.constant 0 : index
      %c0_9 = arith.constant 0 : index
      %10 = vector.load %arg2[%c0_8, %c0_9] : memref<8x1xi32, #tpu.memory_space<vmem>>, vector<8x1xi32>
      %11 = tpu.iota {dimensions = array<i32: 1>} : vector<8x16xi32>
      %12 = vector.broadcast %10 : vector<8x1xi32> to vector<8x16xi32>
      %13 = arith.cmpi eq, %11, %12 : vector<8x16xi32>
      %14 = arith.extui %13 : vector<8x16xi1> to vector<8x16xi32>
      %15 = arith.sitofp %14 : vector<8x16xi32> to vector<8x16xf32>
      %16 = arith.truncf %15 : vector<8x16xf32> to vector<8x16xbf16>
      %c0_10 = arith.constant 0 : index
      %c0_11 = arith.constant 0 : index
      %17 = vector.load %arg3[%c0_10, %c0_11] : memref<16x128xbf16, #tpu.memory_space<vmem>>, vector<16x128xbf16>
      %cst_12 = arith.constant dense<0.000000e+00> : vector<8x128xf32>
      %18 = tpu.matmul %16, %17, %cst_12 {dimension_numbers = #tpu.dot_dimension_numbers<[1], [0], [0], [1], [0, 0, 1, 1], [], []>} : vector<8x16xbf16>, vector<16x128xbf16>, vector<8x128xf32> -> vector<8x128xf32>
      %19 = arith.negf %18 : vector<8x128xf32>
      %20 = math.exp %19 : vector<8x128xf32>
      %cst_13 = arith.constant 1.000000e+00 : f32
      %21 = vector.broadcast %cst_13 : f32 to vector<8x128xf32>
      %22 = arith.addf %21, %20 : vector<8x128xf32>
      %23 = arith.divf %21, %22 : vector<8x128xf32>
      %24 = arith.mulf %18, %23 : vector<8x128xf32>
      %25 = arith.truncf %24 : vector<8x128xf32> to vector<8x128xbf16>
      %c0_14 = arith.constant 0 : index
      %c0_15 = arith.constant 0 : index
      %26 = vector.load %arg7[%c0_14, %c0_15] : memref<8x128xbf16, #tpu.memory_space<vmem>>, vector<8x128xbf16>
      tpu.vector_store %arg7[%c0_14, %c0_15], %25 {strides = array<i32>} : memref<8x128xbf16, #tpu.memory_space<vmem>>, vector<8x128xbf16>,
    } else {
    }
    %c0 = arith.constant 0 : index
    %c0_1 = arith.constant 0 : index
    %3 = vector.load %arg7[%c0, %c0_1] : memref<8x128xbf16, #tpu.memory_space<vmem>>, vector<8x128xbf16>
    %c0_2 = arith.constant 0 : index
    %c0_3 = arith.constant 0 : index
    %4 = vector.load %arg4[%c0_2, %c0_3] : memref<128x128xbf16, #tpu.memory_space<vmem>>, vector<128x128xbf16>
    %cst = arith.constant dense<0.000000e+00> : vector<8x128xf32>
    %5 = tpu.matmul %3, %4, %cst {dimension_numbers = #tpu.dot_dimension_numbers<[1], [0], [0], [1], [0, 0, 1, 1], [], []>} : vector<8x128xbf16>, vector<128x128xbf16>, vector<8x128xf32> -> vector<8x128xf32>
    %c0_4 = arith.constant 0 : index
    %c0_5 = arith.constant 0 : index
    %6 = vector.load %arg5[%c0_4, %c0_5] : memref<1x128xf32, #tpu.memory_space<vmem>>, vector<1x128xf32>
    %7 = vector.broadcast %6 : vector<1x128xf32> to vector<8x128xf32>
    %8 = arith.addf %5, %7 : vector<8x128xf32>
    %c0_6 = arith.constant 0 : index
    %c0_7 = arith.constant 0 : index
    %9 = vector.load %arg6[%c0_6, %c0_7] : memref<8x128xf32, #tpu.memory_space<vmem>>, vector<8x128xf32>
    tpu.vector_store %arg6[%c0_6, %c0_7], %8 {strides = array<i32>} : memref<8x128xf32, #tpu.memory_space<vmem>>, vector<8x128xf32>,
    return
  }
  func.func @transform_0(%arg0: i32, %arg1: i32) -> (i32, i32) {
    %c0_i32 = arith.constant 0 : i32
    %c0_i32_0 = arith.constant 0 : i32
    return %arg0, %c0_i32 : i32, i32
  }
  func.func @transform_1(%arg0: i32, %arg1: i32) -> (i32, i32) {
    %c0_i32 = arith.constant 0 : i32
    %c0_i32_0 = arith.constant 0 : i32
    %c0_i32_1 = arith.constant 0 : i32
    return %c0_i32, %c0_i32_0 : i32, i32
  }
  func.func @transform_2(%arg0: i32, %arg1: i32) -> (i32, i32) {
    %c0_i32 = arith.constant 0 : i32
    %c0_i32_0 = arith.constant 0 : i32
    return %c0_i32, %arg1 : i32, i32
  }
  func.func @transform_3(%arg0: i32, %arg1: i32) -> (i32, i32) {
    %c0_i32 = arith.constant 0 : i32
    %c0_i32_0 = arith.constant 0 : i32
    return %c0_i32, %arg1 : i32, i32
  }
  func.func @transform_4(%arg0: i32, %arg1: i32) -> (i32, i32) {
    %c0_i32 = arith.constant 0 : i32
    return %arg0, %arg1 : i32, i32
  }
}

</mosaic_0001>

<llo_original>
// kernel: tpu_custom_call.1
$region0: #{tpu_custom_call.1}
  #allocation0 [shape = 'u32[]', space=smem, size = 0x4, offset = 0x4, fixed_abs, tag = 'smem constant byte address 0x4 - core index']
  #allocation1 [shape = 'u32[72,128]{1,0:T(1,128)}', space=vmem, size = 0x9000, scoped, tag = 'internal scratch']
  #allocation2 [shape = 'bf16[8,128]{1,0:T(8,128)(2,1)}', space=vmem, size = 0x800, scoped, tag = 'scratch operand']
  %s0 = inlined_call_operand.vmem [shape: s32[8,1], index: 0, kind: input, shape index: {}]
  %s1 = inlined_call_operand.vmem [shape: bf16[16,128], index: 1, kind: input, shape index: {}]
  %s2 = inlined_call_operand.hbm [shape: bf16[128,128], index: 2, kind: input, shape index: {}]
  %s3 = inlined_call_operand.vmem [shape: f32[1,128], index: 3, kind: input, shape index: {}]
  %s4 = inlined_call_operand.hbm [shape: f32[8,128], index: 4, kind: output, shape index: {}]
  %s5 = sld [smem:[#allocation0]]
  $region34: #{tpu_custom_call.1} parent=0
    _
  %s7 = ssub.s32 1, %s5
  %s8 = scalar_select 0, %s7, %s5
  $region1: #{tpu_custom_call.1} parent=0
    #allocation3 [shape = 'u8[32768]{0}', space=vmem, size = 0x8000, scoped, tag = 'input window, operand 2, single buffered']
    #allocation4 [shape = 's32[1]{0}', space=sflag, size = 0x4, scoped, tag = 'scoped memory for tpu_custom_call.1']
    #allocation5 [shape = 's32[1]{0}', space=sflag, size = 0x4, scoped, tag = 'scoped memory for tpu_custom_call.1']
    #allocation6 [shape = 'u8[4096]{0}', space=vmem, size = 0x1000, scoped, tag = 'output window, operand 0, single buffered']
    %9 = vsyncpa [#allocation4], 0
    %10 = vsyncpa [#allocation5], 0
    // Predicated region
    $region2: #{tpu_custom_call.1} parent=1 // pred_check
      _
    $region3: #{tpu_custom_call.1} parent=1 // pred_check_branch
      %12 = sbr.rel (0) target = $region5
    $region4: #{tpu_custom_call.1} parent=1 // pred_region
      _
    $region5: #{tpu_custom_call.1} parent=1 // pred_fallthru
      _
    // Predicated region
    $region6: #{tpu_custom_call.1} parent=1 // pred_check
      _
    $region7: #{tpu_custom_call.1} parent=1 // pred_check_branch
      %14 = sbr.rel (0) target = $region9
    $region8: #{tpu_custom_call.1} parent=1 // pred_region
      _
    $region9: #{tpu_custom_call.1} parent=1 // pred_fallthru
      _
    // Predicated region
    $region10: #{tpu_custom_call.1} parent=1 // pred_check
      _
    $region11: #{tpu_custom_call.1} parent=1 // pred_check_branch
      %16 = sbr.rel (0) target = $region13
    $region12: #{tpu_custom_call.1} parent=1 // pred_region
      %18 = vsyncadd [#allocation4], 0
      %s19 = sshll.u32 %s2, 4
      %s20 = int_to_ptr.hbm [resolvable:$true] %s19
      %s21 = sshll.u32 [#allocation3], 4
      %s22 = int_to_ptr.vmem [resolvable:$true] %s21
      %27 = dma.hbm_to_vmem [thread:$0]  %s20, 1024, %s22, [#allocation4], 64, 64, 4
    $region13: #{tpu_custom_call.1} parent=1 // pred_fallthru
      _
    // Predicated region
    $region14: #{tpu_custom_call.1} parent=1 // pred_check
      _
    $region15: #{tpu_custom_call.1} parent=1 // pred_check_branch
      %29 = sbr.rel (0) target = $region17
    $region16: #{tpu_custom_call.1} parent=1 // pred_region
      _
    $region17: #{tpu_custom_call.1} parent=1 // pred_fallthru
      _
    // Predicated region
    $region18: #{tpu_custom_call.1} parent=1 // pred_check
      _
    $region19: #{tpu_custom_call.1} parent=1 // pred_check_branch
      %31 = sbr.rel (0) target = $region21
    $region20: #{tpu_custom_call.1} parent=1 // pred_region
      %33 = dma.done [#allocation4], 1024
    $region21: #{tpu_custom_call.1} parent=1 // pred_fallthru
      _
    %p35 = scmp.eq.s32.totalorder 0, 0
    // Predicated region
    $region22: #{tpu_custom_call.1} parent=1 // pred_check
      %p36 = pneg %p35
    $region23: #{tpu_custom_call.1} parent=1 // pred_check_branch
      %38 = sbr.rel (%p36) target = $region25
    $region24: #{tpu_custom_call.1} parent=1 // pred_region
      %v39 = vld [vmem:[%s0] sm:$0xff]
      %v40 = vlaneseq
      %v41 = vand.u32 %v40, 127
      %42 = vset.pattern.permute.xlu0 0
      %43 = vperm.xlu0 %42, %v39
      %v44 = vpop.permute.xlu0 %43
      %vm45 = vcmp.eq.s32.totalorder %v41, %v44
      %v46 = vsel %vm45, 1, 0
      %v47 = vcvt.s32.f32 %v46
      %v48 = vpack.c.bf16 %v47, %v47
      %v49 = vld [vmem:[%s1] sm:$0xf]
      %v50 = vld [vmem:[%s1 + $0x4] sm:$0xf]
      %v53 = vunpack.c.l.b16 %v49
      %v54 = vunpack.c.l.b16 %v50
      %v55 = vpack.c.b16 %v54, %v53
      %vm57 = vcmask 130048
      %v59 = vsel %vm57, %v48, 0
      %61 = vmatpush.bf16.msra.mxu0 0
      %62 = vmatpush.bf16.msra.mxu0 0
      %63 = vmatpush.bf16.msra.mxu0 0
      %64 = vmatpush.bf16.msra.mxu0 0
      %65 = vmatpush.bf16.msra.mxu0 0
      %66 = vmatpush.bf16.msra.mxu0 0
      %67 = vmatpush.bf16.msra.mxu0 0
      %68 = vmatpush.bf16.msra.mxu0 %v55
      %69 = vmatmul.bf16.gmra.mxu0 %v59
      %v70 = vpop.f32.mrf.mxu0
      %v71 = vadd.f32 0.0, %v70
      %v72 = vpop.f32.mrf.mxu0
      %73 = vdwg.mxu0
      %v74 = vxor.u32 %v71, 2147483648
      %v75 = vmul.f32 %v74, 1.442695
      %v76 = vpow.pop %v75
      %v77 = vadd.f32 %v76, 1.0
      %v78 = vrcp.pop %v77
      %v79 = vmul.f32 %v77, %v78
      %v80 = vsub.f32 1.0, %v79
      %v81 = vmul.f32 %v78, %v80
      %v82 = vadd.f32 %v78, %v81
      %vm83 = vweird.f32 %v77
      %vm84 = vweird.f32 %v78
      %vm85 = vmor %vm83, %vm84
      %v86 = vsel %vm85, %v78, %v82
      %v87 = vand.u32 2147483647, %v77
      %vm88 = vcmp.eq.f32.partialorder %v87, 8.507059e+37
      %v89 = vand.u32 %v77, 2147483648
      %v90 = vor.u32 1.1754944e-38, %v89
      %v91 = vsel %vm88, %v90, %v86
      %v92 = vmul.f32 1.0, %v91
      %v93 = vmul.f32 %v71, %v92
      %v94 = vpack.c.bf16 %v93, %v93
      %95 = vst [vmem:[#allocation2] sm:$0xf] %v94
    $region25: #{tpu_custom_call.1} parent=1 // pred_fallthru
      _
    %v96 = vld [vmem:[#allocation2] sm:$0xf]
    %v97 = vld [vmem:[#allocation3] sm:$0xf]
    %v98 = vld [vmem:[#allocation3 + $0x4] sm:$0xf]
    %v99 = vld [vmem:[#allocation3 + $0x8] sm:$0xf]
    %v100 = vld [vmem:[#allocation3 + $0xc] sm:$0xf]
    %v101 = vld [vmem:[#allocation3 + $0x10] sm:$0xf]
    %v102 = vld [vmem:[#allocation3 + $0x14] sm:$0xf]
    %v103 = vld [vmem:[#allocation3 + $0x18] sm:$0xf]
    %v104 = vld [vmem:[#allocation3 + $0x1c] sm:$0xf]
    %v105 = vld [vmem:[#allocation3 + $0x20] sm:$0xf]
    %v106 = vld [vmem:[#allocation3 + $0x24] sm:$0xf]
    %v107 = vld [vmem:[#allocation3 + $0x28] sm:$0xf]
    %v108 = vld [vmem:[#allocation3 + $0x2c] sm:$0xf]
    %v109 = vld [vmem:[#allocation3 + $0x30] sm:$0xf]
    %v110 = vld [vmem:[#allocation3 + $0x34] sm:$0xf]
    %v111 = vld [vmem:[#allocation3 + $0x38] sm:$0xf]
    %v112 = vld [vmem:[#allocation3 + $0x3c] sm:$0xf]
    %v113 = vld [vmem:[%s3] sm:$0x1]
    %v115 = vperm.slane %v113, 0
    %v133 = vunpack.c.l.b16 %v97
    %v134 = vunpack.c.l.b16 %v98
    %v135 = vunpack.c.l.b16 %v99
    %v136 = vunpack.c.l.b16 %v100
    %v137 = vunpack.c.l.b16 %v101
    %v138 = vunpack.c.l.b16 %v102
    %v139 = vunpack.c.l.b16 %v103
    %v140 = vunpack.c.l.b16 %v104
    %v141 = vunpack.c.l.b16 %v105
    %v142 = vunpack.c.l.b16 %v106
    %v143 = vunpack.c.l.b16 %v107
    %v144 = vunpack.c.l.b16 %v108
    %v145 = vunpack.c.l.b16 %v109
    %v146 = vunpack.c.l.b16 %v110
    %v147 = vunpack.c.l.b16 %v111
    %v148 = vunpack.c.l.b16 %v112
    %v149 = vpack.c.b16 %v134, %v133
    %v150 = vpack.c.b16 %v136, %v135
    %v151 = vpack.c.b16 %v138, %v137
    %v152 = vpack.c.b16 %v140, %v139
    %v153 = vpack.c.b16 %v142, %v141
    %v154 = vpack.c.b16 %v144, %v143
    %v155 = vpack.c.b16 %v146, %v145
    %v156 = vpack.c.b16 %v148, %v147
    %165 = vmatpush.bf16.msra.mxu0 %v156
    %166 = vmatpush.bf16.msra.mxu0 %v155
    %167 = vmatpush.bf16.msra.mxu0 %v154
    %168 = vmatpush.bf16.msra.mxu0 %v153
    %169 = vmatpush.bf16.msra.mxu0 %v152
    %170 = vmatpush.bf16.msra.mxu0 %v151
    %171 = vmatpush.bf16.msra.mxu0 %v150
    %172 = vmatpush.bf16.msra.mxu0 %v149
    %173 = vmatmul.bf16.gmra.mxu0 %v96
    %v174 = vpop.f32.mrf.mxu0
    %v175 = vadd.f32 %v115, %v174
    %v176 = vpop.f32.mrf.mxu0
    %177 = vdwg.mxu0
    %178 = vst [vmem:[#allocation6] sm:$0xff] %v175
    // Predicated region
    $region26: #{tpu_custom_call.1} parent=1 // pred_check
      _
    $region27: #{tpu_custom_call.1} parent=1 // pred_check_branch
      %180 = sbr.rel (0) target = $region29
    $region28: #{tpu_custom_call.1} parent=1 // pred_region
      %182 = vsyncadd [#allocation5], 0
      %s184 = sshll.u32 [#allocation6], 4
      %s185 = int_to_ptr.vmem [resolvable:$true] %s184
      %s186 = sshll.u32 %s4, 4
      %s187 = int_to_ptr.hbm [resolvable:$true] %s186
      %189 = dma.vmem_to_hbm [thread:$0]  %s185, 128, %s187, [#allocation5]
    $region29: #{tpu_custom_call.1} parent=1 // pred_fallthru
      _
    // Predicated region
    $region30: #{tpu_custom_call.1} parent=1 // pred_check
      _
    $region31: #{tpu_custom_call.1} parent=1 // pred_check_branch
      %191 = sbr.rel (0) target = $region33
    $region32: #{tpu_custom_call.1} parent=1 // pred_region
      %193 = dma.done [#allocation5], 128
    $region33: #{tpu_custom_call.1} parent=1 // pred_fallthru
      _
    %194 = vsyncpa [#allocation4], 1
    %195 = vsyncpa [#allocation5], 1

</llo_original>
